<compile_context>
chip_gen: v7x
topology: tpu7x:2x2x1
jax: 0.10.0
libtpu: 0.0.40
codegen_flags: <defaults>
</compile_context>

<pallas_src>
import functools

import jax
import jax.numpy as jnp
from jax import lax
from jax.experimental import pallas as pl
from jax.experimental.pallas import tpu as pltpu


# ----------------------------------------------------------------------------
# Kernel
# ----------------------------------------------------------------------------
def critic_kernel(use_z_score, obs_dim, act_dim,
                  x_ref, w1_ref, w2_ref, aux_ref, out_ref):
    """x_ref: (B, obs+act) f32, w1_ref: (obs+act, 256) bf16,
    w2_ref: (256, 256) bf16, aux_ref: (4, 256) f32 with rows
    [b1, b2, w3_row, (b3, 0, ...)], out_ref: (B, 128) f32."""
    x = x_ref[...].astype(jnp.float32)            # (B, obs+act)
    batch = x.shape[0]

    if use_z_score:
        # torch-style z-score per tensor (s and a separately), done with a
        # lane mask on the concatenated block -> pure VPU/XLU work.
        col = lax.broadcasted_iota(jnp.int32, x.shape, 1)
        is_s = col < obs_dim

        def masked_stats(mask, n):
            mean = jnp.sum(jnp.where(mask, x, 0.0)) / n
            cen = jnp.where(mask, x - mean, 0.0)
            var = jnp.sum(cen * cen) / max(n - 1, 1)   # unbiased, torch.std
            return mean, jnp.sqrt(var)

        mean_s, std_s = masked_stats(is_s, batch * obs_dim)
        mean_a, std_a = masked_stats(jnp.logical_not(is_s), batch * act_dim)
        x = jnp.where(is_s,
                      (x - mean_s) / (std_s + 1e-8),
                      (x - mean_a) / (std_a + 1e-8))

    b1 = aux_ref[0:1, :]
    b2 = aux_ref[1:2, :]
    w3_row = aux_ref[2:3, :]
    b3 = aux_ref[3:4, 0:1]

    # l1: relu(x @ W1 + b1) -- bf16 MXU operands, f32 accumulation.
    h1 = jnp.dot(x.astype(jnp.bfloat16), w1_ref[...],
                 preferred_element_type=jnp.float32) + b1
    h1 = jnp.maximum(h1, 0.0)

    # l2: relu(h1 @ W2 + b2)
    h2 = jnp.dot(h1.astype(jnp.bfloat16), w2_ref[...],
                 preferred_element_type=jnp.float32) + b2
    h2 = jnp.maximum(h2, 0.0)

    # l3 (out_features = 1): VPU multiply + lane reduction instead of a
    # degenerate N=1 MXU matmul.
    q = jnp.sum(h2 * w3_row, axis=-1, keepdims=True) + b3     # (B, 1)

    # Lane-dense, unmasked store; wrapper slices column 0.
    out_ref[...] = jnp.broadcast_to(q, out_ref.shape).astype(out_ref.dtype)


# ----------------------------------------------------------------------------
# Wrapper
# ----------------------------------------------------------------------------
def critic_forward(params, s, a, *, use_z_score_normalization=True):
    """Critic forward pass in one Pallas call.

    params: w1 (obs+act, 256) bf16, b1 (256,) f32, w2 (256, 256) bf16,
            b2 (256,) f32, w3 (256,) f32 (the single output row), b3 () f32.
    s: [B, obs_dim] f32, a: [B, action_dim] f32.  Returns [B, 1] f32.
    """
    batch, obs_dim = s.shape
    act_dim = a.shape[1]
    hidden = params["w2"].shape[0]

    # Concat in the wrapper (tiny copy, fused by XLA) -> single K matmul.
    x = jnp.concatenate([s, a], axis=1).astype(jnp.float32)

    # Pack biases + w3 row + b3 into one operand (fewer DMA descriptors).
    # Under jit / in a training loop this packing is constant-folded.
    aux = jnp.zeros((4, hidden), jnp.float32)
    aux = aux.at[0].set(params["b1"])
    aux = aux.at[1].set(params["b2"])
    aux = aux.at[2].set(params["w3"])
    aux = aux.at[3, 0].set(params["b3"])

    vmem = pl.BlockSpec(memory_space=pltpu.MemorySpace.VMEM)
    kernel = functools.partial(critic_kernel, use_z_score_normalization,
                               obs_dim, act_dim)

    out = pl.pallas_call(
        kernel,
        out_shape=jax.ShapeDtypeStruct((batch, 128), jnp.float32),
        in_specs=[vmem, vmem, vmem, vmem],
        out_specs=vmem,
    )(x,
      params["w1"].astype(jnp.bfloat16),
      params["w2"].astype(jnp.bfloat16),
      aux)
    return out[:, :1]


# ----------------------------------------------------------------------------
# Deterministic parameter init: orthogonal weights (gain=1), zero bias,
# matching the module's use_orthogonal_init=True branch.
# ----------------------------------------------------------------------------
def _orthogonal(key, out_features, in_features):
    n = max(out_features, in_features)
    g = jax.random.normal(key, (n, n), dtype=jnp.float32)
    q, r = jnp.linalg.qr(g)
    q = q * jnp.sign(jnp.diag(r))
    w = q[:out_features, :in_features]        # torch layout (out, in)
    return jnp.asarray(w, jnp.float32).T      # stored as (in, out)


def init_critic_params(key, obs_dim, action_dim, hidden=256):
    k1, k2, k3 = jax.random.split(key, 3)
    in_dim = obs_dim + action_dim
    return {
        # MXU operands stored bf16 (halves the dominant w2 DMA bytes).
        "w1": _orthogonal(k1, hidden, in_dim).astype(jnp.bfloat16),
        "b1": jnp.zeros((hidden,), jnp.float32),
        "w2": _orthogonal(k2, hidden, hidden).astype(jnp.bfloat16),
        "b2": jnp.zeros((hidden,), jnp.float32),
        "w3": _orthogonal(k3, 1, hidden).reshape(hidden).astype(jnp.float32),
        "b3": jnp.zeros((), jnp.float32),
    }


# ----------------------------------------------------------------------------
# Pure-JAX reference (same bf16 weight precision as the kernel).
# ----------------------------------------------------------------------------
def critic_ref(params, s, a, *, use_z_score_normalization=True):
    def zs(x):
        n = x.size
        mean = jnp.mean(x)
        std = jnp.sqrt(jnp.sum((x - mean) ** 2) / max(n - 1, 1))
        return (x - mean) / (std + 1e-8)

    if use_z_score_normalization:
        s, a = zs(s), zs(a)
    x = jnp.concatenate([s, a], axis=1)
    h = jnp.dot(x.astype(jnp.bfloat16), params["w1"].astype(jnp.bfloat16),
                preferred_element_type=jnp.float32) + params["b1"][None, :]
    h = jnp.maximum(h, 0.0)
    h = jnp.dot(h.astype(jnp.bfloat16), params["w2"].astype(jnp.bfloat16),
                preferred_element_type=jnp.float32) + params["b2"][None, :]
    h = jnp.maximum(h, 0.0)
    return jnp.sum(h * params["w3"][None, :], axis=-1, keepdims=True) + params["b3"]


if __name__ == "__main__":
    key = jax.random.PRNGKey(0)
    k_params, k_s, k_a = jax.random.split(key, 3)

    batch, obs_dim, action_dim = 2, 12, 4
    params = init_critic_params(k_params, obs_dim, action_dim)

    s = jax.random.normal(k_s, (batch, obs_dim), dtype=jnp.float32)
    a = jax.random.normal(k_a, (batch, action_dim), dtype=jnp.float32)

    q = critic_forward(params, s, a, use_z_score_normalization=True)
    q = jax.block_until_ready(q)

    q_ref = critic_ref(params, s, a, use_z_score_normalization=True)
    assert q.shape == (batch, 1), q.shape
    assert jnp.allclose(q, q_ref, atol=1e-2, rtol=1e-2), (q, q_ref)

    # Also exercise the no-normalization branch.
    q2 = jax.block_until_ready(
        critic_forward(params, s, a, use_z_score_normalization=False))
    q2_ref = critic_ref(params, s, a, use_z_score_normalization=False)
    assert jnp.allclose(q2, q2_ref, atol=1e-2, rtol=1e-2), (q2, q2_ref)

    print("KERNEL_OK")
</pallas_src>

<mosaic_0001>
module attributes {stable_mosaic.version = 11 : i64} {
  func.func @critic_kernel(%arg0: memref<2x16xf32, #tpu.memory_space<vmem>>, %arg1: memref<16x256xbf16, #tpu.memory_space<vmem>>, %arg2: memref<256x256xbf16, #tpu.memory_space<vmem>>, %arg3: memref<4x256xf32, #tpu.memory_space<vmem>>, %arg4: memref<2x128xf32, #tpu.memory_space<vmem>>) attributes {dimension_semantics = [], scalar_prefetch = 0 : i64, scratch_operands = 0 : i64, tpu.core_type = #tpu.core_type<tc>} {
    %c0 = arith.constant 0 : index
    %c0_0 = arith.constant 0 : index
    %0 = vector.load %arg0[%c0, %c0_0] : memref<2x16xf32, #tpu.memory_space<vmem>>, vector<2x16xf32>
    %1 = tpu.iota {dimensions = array<i32: 1>} : vector<2x16xi32>
    %c12_i32 = arith.constant 12 : i32
    %2 = vector.broadcast %c12_i32 : i32 to vector<2x16xi32>
    %3 = arith.cmpi slt, %1, %2 : vector<2x16xi32>
    %cst = arith.constant 0.000000e+00 : f32
    %4 = vector.broadcast %cst : f32 to vector<2x16xf32>
    %5 = arith.select %3, %0, %4 : vector<2x16xi1>, vector<2x16xf32>
    %6 = vector.shape_cast %5 : vector<2x16xf32> to vector<1x2x16xf32>
    %cst_1 = arith.constant dense<0.000000e+00> : vector<1xf32>
    %7 = vector.multi_reduction <add>, %6, %cst_1 [1, 2] : vector<1x2x16xf32> to vector<1xf32>
    %8 = vector.shape_cast %7 : vector<1xf32> to vector<1x1x1xf32>
    %9 = vector.extract %8[0, 0, 0] : f32 from vector<1x1x1xf32>
    %cst_2 = arith.constant 2.400000e+01 : f32
    %10 = arith.divf %9, %cst_2 : f32
    %11 = vector.broadcast %10 : f32 to vector<2x16xf32>
    %12 = arith.subf %0, %11 : vector<2x16xf32>
    %cst_3 = arith.constant 0.000000e+00 : f32
    %13 = vector.broadcast %cst_3 : f32 to vector<2x16xf32>
    %14 = arith.select %3, %12, %13 : vector<2x16xi1>, vector<2x16xf32>
    %15 = arith.mulf %14, %14 : vector<2x16xf32>
    %16 = vector.shape_cast %15 : vector<2x16xf32> to vector<1x2x16xf32>
    %cst_4 = arith.constant dense<0.000000e+00> : vector<1xf32>
    %17 = vector.multi_reduction <add>, %16, %cst_4 [1, 2] : vector<1x2x16xf32> to vector<1xf32>
    %18 = vector.shape_cast %17 : vector<1xf32> to vector<1x1x1xf32>
    %19 = vector.extract %18[0, 0, 0] : f32 from vector<1x1x1xf32>
    %cst_5 = arith.constant 2.300000e+01 : f32
    %20 = arith.divf %19, %cst_5 : f32
    %21 = math.sqrt %20 : f32
    %cst_6 = arith.constant dense<true> : vector<2x16xi1>
    %22 = arith.xori %3, %cst_6 : vector<2x16xi1>
    %cst_7 = arith.constant 0.000000e+00 : f32
    %23 = vector.broadcast %cst_7 : f32 to vector<2x16xf32>
    %24 = arith.select %22, %0, %23 : vector<2x16xi1>, vector<2x16xf32>
    %25 = vector.shape_cast %24 : vector<2x16xf32> to vector<1x2x16xf32>
    %cst_8 = arith.constant dense<0.000000e+00> : vector<1xf32>
    %26 = vector.multi_reduction <add>, %25, %cst_8 [1, 2] : vector<1x2x16xf32> to vector<1xf32>
    %27 = vector.shape_cast %26 : vector<1xf32> to vector<1x1x1xf32>
    %28 = vector.extract %27[0, 0, 0] : f32 from vector<1x1x1xf32>
    %cst_9 = arith.constant 8.000000e+00 : f32
    %29 = arith.divf %28, %cst_9 : f32
    %30 = vector.broadcast %29 : f32 to vector<2x16xf32>
    %31 = arith.subf %0, %30 : vector<2x16xf32>
    %cst_10 = arith.constant 0.000000e+00 : f32
    %32 = vector.broadcast %cst_10 : f32 to vector<2x16xf32>
    %33 = arith.select %22, %31, %32 : vector<2x16xi1>, vector<2x16xf32>
    %34 = arith.mulf %33, %33 : vector<2x16xf32>
    %35 = vector.shape_cast %34 : vector<2x16xf32> to vector<1x2x16xf32>
    %cst_11 = arith.constant dense<0.000000e+00> : vector<1xf32>
    %36 = vector.multi_reduction <add>, %35, %cst_11 [1, 2] : vector<1x2x16xf32> to vector<1xf32>
    %37 = vector.shape_cast %36 : vector<1xf32> to vector<1x1x1xf32>
    %38 = vector.extract %37[0, 0, 0] : f32 from vector<1x1x1xf32>
    %cst_12 = arith.constant 7.000000e+00 : f32
    %39 = arith.divf %38, %cst_12 : f32
    %40 = math.sqrt %39 : f32
    %41 = vector.broadcast %10 : f32 to vector<2x16xf32>
    %42 = arith.subf %0, %41 : vector<2x16xf32>
    %cst_13 = arith.constant 9.99999993E-9 : f32
    %43 = arith.addf %21, %cst_13 : f32
    %44 = vector.broadcast %43 : f32 to vector<2x16xf32>
    %45 = arith.divf %42, %44 : vector<2x16xf32>
    %46 = vector.broadcast %29 : f32 to vector<2x16xf32>
    %47 = arith.subf %0, %46 : vector<2x16xf32>
    %cst_14 = arith.constant 9.99999993E-9 : f32
    %48 = arith.addf %40, %cst_14 : f32
    %49 = vector.broadcast %48 : f32 to vector<2x16xf32>
    %50 = arith.divf %47, %49 : vector<2x16xf32>
    %51 = arith.select %3, %45, %50 : vector<2x16xi1>, vector<2x16xf32>
    %c0_15 = arith.constant 0 : index
    %c0_16 = arith.constant 0 : index
    %52 = vector.load %arg3[%c0_15, %c0_16] : memref<4x256xf32, #tpu.memory_space<vmem>>, vector<1x256xf32>
    %c1 = arith.constant 1 : index
    %c0_17 = arith.constant 0 : index
    %53 = vector.load %arg3[%c1, %c0_17] : memref<4x256xf32, #tpu.memory_space<vmem>>, vector<1x256xf32>
    %c2 = arith.constant 2 : index
    %c0_18 = arith.constant 0 : index
    %54 = vector.load %arg3[%c2, %c0_18] : memref<4x256xf32, #tpu.memory_space<vmem>>, vector<1x256xf32>
    %c3 = arith.constant 3 : index
    %c0_19 = arith.constant 0 : index
    %55 = vector.load %arg3[%c3, %c0_19] : memref<4x256xf32, #tpu.memory_space<vmem>>, vector<1x1xf32>
    %56 = arith.truncf %51 : vector<2x16xf32> to vector<2x16xbf16>
    %c0_20 = arith.constant 0 : index
    %c0_21 = arith.constant 0 : index
    %57 = vector.load %arg1[%c0_20, %c0_21] : memref<16x256xbf16, #tpu.memory_space<vmem>>, vector<16x256xbf16>
    %cst_22 = arith.constant dense<0.000000e+00> : vector<2x256xf32>
    %58 = tpu.matmul %56, %57, %cst_22 {dimension_numbers = #tpu.dot_dimension_numbers<[1], [0], [0], [1], [0, 0, 1, 1], [], []>} : vector<2x16xbf16>, vector<16x256xbf16>, vector<2x256xf32> -> vector<2x256xf32>
    %59 = vector.broadcast %52 : vector<1x256xf32> to vector<2x256xf32>
    %60 = arith.addf %58, %59 : vector<2x256xf32>
    %cst_23 = arith.constant 0.000000e+00 : f32
    %61 = vector.broadcast %cst_23 : f32 to vector<2x256xf32>
    %62 = arith.maximumf %60, %61 : vector<2x256xf32>
    %63 = arith.truncf %62 : vector<2x256xf32> to vector<2x256xbf16>
    %c0_24 = arith.constant 0 : index
    %c0_25 = arith.constant 0 : index
    %64 = vector.load %arg2[%c0_24, %c0_25] : memref<256x256xbf16, #tpu.memory_space<vmem>>, vector<256x256xbf16>
    %cst_26 = arith.constant dense<0.000000e+00> : vector<2x256xf32>
    %65 = tpu.matmul %63, %64, %cst_26 {dimension_numbers = #tpu.dot_dimension_numbers<[1], [0], [0], [1], [0, 0, 1, 1], [], []>} : vector<2x256xbf16>, vector<256x256xbf16>, vector<2x256xf32> -> vector<2x256xf32>
    %66 = vector.broadcast %53 : vector<1x256xf32> to vector<2x256xf32>
    %67 = arith.addf %65, %66 : vector<2x256xf32>
    %cst_27 = arith.constant 0.000000e+00 : f32
    %68 = vector.broadcast %cst_27 : f32 to vector<2x256xf32>
    %69 = arith.maximumf %67, %68 : vector<2x256xf32>
    %70 = vector.broadcast %54 : vector<1x256xf32> to vector<2x256xf32>
    %71 = arith.mulf %69, %70 : vector<2x256xf32>
    %cst_28 = arith.constant dense<0.000000e+00> : vector<2xf32>
    %72 = vector.multi_reduction <add>, %71, %cst_28 [1] : vector<2x256xf32> to vector<2xf32>
    %73 = vector.shape_cast %72 : vector<2xf32> to vector<2x1xf32>
    %74 = vector.broadcast %55 : vector<1x1xf32> to vector<2x1xf32>
    %75 = arith.addf %73, %74 : vector<2x1xf32>
    %76 = vector.shape_cast %75 : vector<2x1xf32> to vector<2x1xf32>
    %77 = vector.broadcast %76 : vector<2x1xf32> to vector<2x128xf32>
    %c0_29 = arith.constant 0 : index
    %c0_30 = arith.constant 0 : index
    %78 = vector.load %arg4[%c0_29, %c0_30] : memref<2x128xf32, #tpu.memory_space<vmem>>, vector<2x128xf32>
    tpu.vector_store %arg4[%c0_29, %c0_30], %77 {strides = array<i32>} : memref<2x128xf32, #tpu.memory_space<vmem>>, vector<2x128xf32>,
    return
  }
}

</mosaic_0001>

<llo_original>
// kernel: tpu_custom_call.1
$region0: #{tpu_custom_call.1}
  #allocation0 [shape = 'u32[]', space=smem, size = 0x4, offset = 0x4, fixed_abs, tag = 'smem constant byte address 0x4 - core index']
  #allocation1 [shape = 'u32[144,128]{1,0:T(1,128)}', space=vmem, size = 0x12000, scoped, tag = 'internal scratch']
  %s0 = inlined_call_operand.hbm [shape: f32[2,16], index: 0, kind: input, shape index: {}]
  %s1 = inlined_call_operand.hbm [shape: bf16[16,256], index: 1, kind: input, shape index: {}]
  %s2 = inlined_call_operand.hbm [shape: bf16[256,256], index: 2, kind: input, shape index: {}]
  %s3 = inlined_call_operand.vmem [shape: f32[4,256], index: 3, kind: input, shape index: {}]
  %s4 = inlined_call_operand.hbm [shape: f32[2,128], index: 4, kind: output, shape index: {}]
  %s5 = sld [smem:[#allocation0]]
  $region38: #{tpu_custom_call.1} parent=0
    _
  %s7 = ssub.s32 1, %s5
  %s8 = scalar_select 0, %s7, %s5
  $region1: #{tpu_custom_call.1} parent=0
    #allocation2 [shape = 'u8[1024]{0}', space=vmem, size = 0x400, scoped, tag = 'input window, operand 0, single buffered']
    #allocation3 [shape = 's32[1]{0}', space=sflag, size = 0x4, scoped, tag = 'scoped memory for tpu_custom_call.1']
    #allocation4 [shape = 's32[1]{0}', space=sflag, size = 0x4, scoped, tag = 'scoped memory for tpu_custom_call.1']
    #allocation5 [shape = 'u8[8192]{0}', space=vmem, size = 0x2000, scoped, tag = 'input window, operand 1, single buffered']
    #allocation6 [shape = 's32[1]{0}', space=sflag, size = 0x4, scoped, tag = 'scoped memory for tpu_custom_call.1']
    #allocation7 [shape = 'u8[131072]{0}', space=vmem, size = 0x20000, scoped, tag = 'input window, operand 2, single buffered']
    #allocation8 [shape = 'u8[1024]{0}', space=vmem, size = 0x400, scoped, tag = 'output window, operand 0, single buffered']
    %9 = vsyncpa [#allocation3], 0
    %10 = vsyncpa [#allocation6], 0
    %11 = vsyncpa [#allocation4], 0
    // Predicated region
    $region2: #{tpu_custom_call.1} parent=1 // pred_check
      _
    $region3: #{tpu_custom_call.1} parent=1 // pred_check_branch
      %13 = sbr.rel (0) target = $region5
    $region4: #{tpu_custom_call.1} parent=1 // pred_region
      %s15 = ssub.s32 32, 32
      %16 = vsyncadd [#allocation3], %s15
      %s18 = sshll.u32 [#allocation2], 4
      %s19 = int_to_ptr.vmem [resolvable:$true] %s18
      %21 = dma.hbm_to_vmem [thread:$0]  %s0, 32, %s19, [#allocation3]
    $region5: #{tpu_custom_call.1} parent=1 // pred_fallthru
      _
    // Predicated region
    $region6: #{tpu_custom_call.1} parent=1 // pred_check
      _
    $region7: #{tpu_custom_call.1} parent=1 // pred_check_branch
      %23 = sbr.rel (0) target = $region9
    $region8: #{tpu_custom_call.1} parent=1 // pred_region
      %s25 = ssub.s32 256, 256
      %26 = vsyncadd [#allocation6], %s25
      %s27 = sshll.u32 [#allocation5], 4
      %s28 = int_to_ptr.vmem [resolvable:$true] %s27
      %33 = dma.hbm_to_vmem [thread:$0]  %s1, 256, %s28, [#allocation6], 128, 128, 8
    $region9: #{tpu_custom_call.1} parent=1 // pred_fallthru
      _
    // Predicated region
    $region10: #{tpu_custom_call.1} parent=1 // pred_check
      _
    $region11: #{tpu_custom_call.1} parent=1 // pred_check_branch
      %35 = sbr.rel (0) target = $region13
    $region12: #{tpu_custom_call.1} parent=1 // pred_region
      %s37 = ssub.s32 4096, 4096
      %38 = vsyncadd [#allocation6], %s37
      %s39 = sshll.u32 [#allocation7], 4
      %s40 = int_to_ptr.vmem [resolvable:$true] %s39
      %45 = dma.hbm_to_vmem [thread:$0]  %s2, 4096, %s40, [#allocation6], 128, 128, 8
    $region13: #{tpu_custom_call.1} parent=1 // pred_fallthru
      _
    // Predicated region
    $region14: #{tpu_custom_call.1} parent=1 // pred_check
      _
    $region15: #{tpu_custom_call.1} parent=1 // pred_check_branch
      %47 = sbr.rel (0) target = $region17
    $region16: #{tpu_custom_call.1} parent=1 // pred_region
      _
    $region17: #{tpu_custom_call.1} parent=1 // pred_fallthru
      _
    // Predicated region
    $region18: #{tpu_custom_call.1} parent=1 // pred_check
      _
    $region19: #{tpu_custom_call.1} parent=1 // pred_check_branch
      %49 = sbr.rel (0) target = $region21
    $region20: #{tpu_custom_call.1} parent=1 // pred_region
      %50 = dma.done [#allocation3], 32
    $region21: #{tpu_custom_call.1} parent=1 // pred_fallthru
      _
    // Predicated region
    $region22: #{tpu_custom_call.1} parent=1 // pred_check
      _
    $region23: #{tpu_custom_call.1} parent=1 // pred_check_branch
      %52 = sbr.rel (0) target = $region25
    $region24: #{tpu_custom_call.1} parent=1 // pred_region
      %53 = dma.done [#allocation6], 256
    $region25: #{tpu_custom_call.1} parent=1 // pred_fallthru
      _
    // Predicated region
    $region26: #{tpu_custom_call.1} parent=1 // pred_check
      _
    $region27: #{tpu_custom_call.1} parent=1 // pred_check_branch
      %55 = sbr.rel (0) target = $region29
    $region28: #{tpu_custom_call.1} parent=1 // pred_region
      %56 = dma.done [#allocation6], 4096
    $region29: #{tpu_custom_call.1} parent=1 // pred_fallthru
      _
    %v58 = vld [vmem:[#allocation2] sm:$0x3]
    %v59 = vlaneseq
    %v60 = vand.u32 %v59, 127
    %vm61 = vcmp.lt.s32.totalorder %v60, 12
    %v62 = vsel %vm61, %v58, 0.0
    %vm63 = vcmask 123904
    %v64 = vsel %vm63, %v62, 0.0
    %65 = vadd.xlane.f32.xlu0 %v64
    %v66 = vpop.xlane.xlu0 %65
    %v67 = vrot.slane %v66, 4
    %v68 = vadd.f32 %v66, %v67
    %v69 = vrot.slane %v68, 2
    %v70 = vadd.f32 %v68, %v69
    %v71 = vrot.slane %v70, 1
    %v72 = vadd.f32 %v70, %v71
    %s73 = vtos %v72
    %v74 = vrcp.pop 24.0
    %s75 = vtos %v74
    %s76 = smul.f32 %s73, %s75
    %v77 = vstv %s76
    %v78 = vsub.f32 %v58, %v77
    %v79 = vsel %vm61, %v78, 0.0
    %v80 = vmul.f32 %v79, %v79
    %v81 = vsel %vm63, %v80, 0.0
    %82 = vadd.xlane.f32.xlu0 %v81
    %v83 = vpop.xlane.xlu0 %82
    %v84 = vrot.slane %v83, 4
    %v85 = vadd.f32 %v83, %v84
    %v86 = vrot.slane %v85, 2
    %v87 = vadd.f32 %v85, %v86
    %v88 = vrot.slane %v87, 1
    %v89 = vadd.f32 %v87, %v88
    %s90 = vtos %v89
    %v91 = vrcp.pop 23.0
    %s92 = vtos %v91
    %s93 = smul.f32 %s90, %s92
    %v94 = vstv %s93
    %v95 = vrsqrt.pop %v94
    %v96 = vmul.f32 %v94, %v95
    %vm97 = vcmp.eq.f32.partialorder %v94, inf
    %v98 = vsel %vm97, %v94, %v96
    %vm99 = vcmp.eq.f32.partialorder %v94, 0.0
    %v100 = vand.u32 %v94, 2147483648
    %v101 = vsel %vm99, %v100, %v98
    %s102 = vtos %v101
    %vm103 = vmxor %vm61, 1
    %v104 = vsel %vm103, %v58, 0.0
    %v105 = vsel %vm63, %v104, 0.0
    %106 = vadd.xlane.f32.xlu0 %v105
    %v107 = vpop.xlane.xlu0 %106
    %v108 = vrot.slane %v107, 4
    %v109 = vadd.f32 %v107, %v108
    %v110 = vrot.slane %v109, 2
    %v111 = vadd.f32 %v109, %v110
    %v112 = vrot.slane %v111, 1
    %v113 = vadd.f32 %v111, %v112
    %s114 = vtos %v113
    %v115 = vrcp.pop 8.0
    %s116 = vtos %v115
    %s117 = smul.f32 %s114, %s116
    %v118 = vstv %s117
    %v119 = vsub.f32 %v58, %v118
    %v120 = vsel %vm103, %v119, 0.0
    %v121 = vmul.f32 %v120, %v120
    %v122 = vsel %vm63, %v121, 0.0
    %123 = vadd.xlane.f32.xlu0 %v122
    %v124 = vpop.xlane.xlu0 %123
    %v125 = vrot.slane %v124, 4
    %v126 = vadd.f32 %v124, %v125
    %v127 = vrot.slane %v126, 2
    %v128 = vadd.f32 %v126, %v127
    %v129 = vrot.slane %v128, 1
    %v130 = vadd.f32 %v128, %v129
    %s131 = vtos %v130
    %v132 = vrcp.pop 7.0
    %s133 = vtos %v132
    %s134 = smul.f32 %s131, %s133
    %v135 = vstv %s134
    %v136 = vrsqrt.pop %v135
    %v137 = vmul.f32 %v135, %v136
    %vm138 = vcmp.eq.f32.partialorder %v135, inf
    %v139 = vsel %vm138, %v135, %v137
    %vm140 = vcmp.eq.f32.partialorder %v135, 0.0
    %v141 = vand.u32 %v135, 2147483648
    %v142 = vsel %vm140, %v141, %v139
    %s143 = vtos %v142
    %s144 = sadd.f32 %s102, 1e-08
    %v145 = vstv %s144
    %v146 = vrcp.pop %v145
    %v147 = vmul.f32 %v78, %v146
    %s148 = sadd.f32 %s143, 1e-08
    %v149 = vstv %s148
    %v150 = vrcp.pop %v149
    %v151 = vmul.f32 %v119, %v150
    %v152 = vsel %vm61, %v147, %v151
    %v153 = vld [vmem:[%s3] ss:$4 sm:$0x3]
    %s154 = scalar_lea.vmem %s3, 1
    %v155 = vld [vmem:[%s154] ss:$4 sm:$0x3]
    %s156 = scalar_lea.vmem %s3, 2
    %v157 = vld [vmem:[%s156] ss:$4 sm:$0x3]
    %v158 = vld [vmem:[%s3 + $0x3] sm:$0x1]
    %v159 = vpack.c.bf16 %v152, %v152
    %v160 = vld [vmem:[#allocation5] sm:$0xff]
    %v161 = vld [vmem:[#allocation5 + $0x8] sm:$0xff]
    %v163 = vlaneseq
    %v164 = vshrl.u32 %v163, 7
    %v165 = vsub.s32 0, %v164
    %v166 = vrot.slane %v153, %v165
    %v167 = vlaneseq
    %v168 = vshrl.u32 %v167, 7
    %v169 = vsub.s32 1, %v168
    %v170 = vrot.slane %v153, %v169
    %v175 = vunpack.c.l.b16 %v160
    %v176 = vunpack.c.h.b16 %v160
    %v177 = vunpack.c.l.b16 %v161
    %v178 = vunpack.c.h.b16 %v161
    %v179 = vpack.c.b16 %v177, %v175
    %v180 = vpack.c.b16 %v178, %v176
    %vm183 = vcmask 130048
    %v185 = vsel %vm183, %v159, 0
    %187 = vmatprep.subr.bf16.mxu0 %v180
    %188 = vmatpush1.bf16.msra.mxu0 %v179
    %189 = vmatprep.subr.bf16.mxu0 0
    %190 = vmatpush1.bf16.msra.mxu0 0
    %191 = vmatprep.subr.bf16.mxu0 0
    %192 = vmatpush1.bf16.msra.mxu0 0
    %193 = vmatprep.subr.bf16.mxu0 0
    %194 = vmatpush1.bf16.msra.mxu0 0
    %195 = vmatprep.subr.bf16.mxu0 0
    %196 = vmatpush1.bf16.msra.mxu0 0
    %197 = vmatprep.subr.bf16.mxu0 0
    %198 = vmatpush1.bf16.msra.mxu0 0
    %199 = vmatprep.subr.bf16.mxu0 0
    %200 = vmatpush1.bf16.msra.mxu0 0
    %201 = vmatprep.subr.bf16.mxu0 0
    %202 = vmatpush1.bf16.msra.mxu0 0
    %203 = vmatprep.subr.bf16.mxu0 0
    %204 = vmatpush1.bf16.msra.mxu0 0
    %205 = vmatprep.subr.bf16.mxu0 0
    %206 = vmatpush1.bf16.msra.mxu0 0
    %207 = vmatprep.subr.bf16.mxu0 0
    %208 = vmatpush1.bf16.msra.mxu0 0
    %209 = vmatprep.subr.bf16.mxu0 0
    %210 = vmatpush1.bf16.msra.mxu0 0
    %211 = vmatprep.subr.bf16.mxu0 0
    %212 = vmatpush1.bf16.msra.mxu0 0
    %213 = vmatprep.subr.bf16.mxu0 0
    %214 = vmatpush1.bf16.msra.mxu0 0
    %215 = vmatprep.subr.bf16.mxu0 0
    %216 = vmatpush1.bf16.msra.mxu0 0
    %217 = vmatprep.subr.bf16.mxu0 0
    %218 = vmatpush1.bf16.msra.mxu0 0
    %219 = vmatprep.mubr.bf16.mxu0 0
    %220 = vmatmul.mubr.bf16.gmra.mrb[0].mxu0 %v185
    %v221 = vpop.f32.mrb[0].mxu0
    %v222 = vadd.f32 %v166, %v221
    %v223 = vpop.f32.mrb[0].mxu0
    %v224 = vadd.f32 %v170, %v223
    %v225 = vpop.f32.mrb[0].mxu0
    %v226 = vpop.f32.mrb[0].mxu0
    %227 = vdwg.mxu0
    %v228 = vmax.f32 %v222, 0.0
    %v229 = vmax.f32 %v224, 0.0
    %v230 = vpack.c.bf16 %v228, %v228
    %v231 = vpack.c.bf16 %v229, %v229
    %v232 = vld [vmem:[#allocation7] sm:$0xff]
    %v233 = vld [vmem:[#allocation7 + $0x8] sm:$0xff]
    %v234 = vld [vmem:[#allocation7 + $0x10] sm:$0xff]
    %v235 = vld [vmem:[#allocation7 + $0x18] sm:$0xff]
    %v236 = vld [vmem:[#allocation7 + $0x20] sm:$0xff]
    %v237 = vld [vmem:[#allocation7 + $0x28] sm:$0xff]
    %v238 = vld [vmem:[#allocation7 + $0x30] sm:$0xff]
    %v239 = vld [vmem:[#allocation7 + $0x38] sm:$0xff]
    %v240 = vld [vmem:[#allocation7 + $0x40] sm:$0xff]
    %v241 = vld [vmem:[#allocation7 + $0x48] sm:$0xff]
    %v242 = vld [vmem:[#allocation7 + $0x50] sm:$0xff]
    %v243 = vld [vmem:[#allocation7 + $0x58] sm:$0xff]
    %v244 = vld [vmem:[#allocation7 + $0x60] sm:$0xff]
    %v245 = vld [vmem:[#allocation7 + $0x68] sm:$0xff]
    %v246 = vld [vmem:[#allocation7 + $0x70] sm:$0xff]
    %v247 = vld [vmem:[#allocation7 + $0x78] sm:$0xff]
    %v248 = vld [vmem:[#allocation7 + $0x80] sm:$0xff]
    %v249 = vld [vmem:[#allocation7 + $0x88] sm:$0xff]
    %v250 = vld [vmem:[#allocation7 + $0x90] sm:$0xff]
    %v251 = vld [vmem:[#allocation7 + $0x98] sm:$0xff]
    %v252 = vld [vmem:[#allocation7 + $0xa0] sm:$0xff]
    %v253 = vld [vmem:[#allocation7 + $0xa8] sm:$0xff]
    %v254 = vld [vmem:[#allocation7 + $0xb0] sm:$0xff]
    %v255 = vld [vmem:[#allocation7 + $0xb8] sm:$0xff]
    %v256 = vld [vmem:[#allocation7 + $0xc0] sm:$0xff]
    %v257 = vld [vmem:[#allocation7 + $0xc8] sm:$0xff]
    %v258 = vld [vmem:[#allocation7 + $0xd0] sm:$0xff]
    %v259 = vld [vmem:[#allocation7 + $0xd8] sm:$0xff]
    %v260 = vld [vmem:[#allocation7 + $0xe0] sm:$0xff]
    %v261 = vld [vmem:[#allocation7 + $0xe8] sm:$0xff]
    %v262 = vld [vmem:[#allocation7 + $0xf0] sm:$0xff]
    %v263 = vld [vmem:[#allocation7 + $0xf8] sm:$0xff]
    %v265 = vlaneseq
    %v266 = vshrl.u32 %v265, 7
    %v267 = vsub.s32 0, %v266
    %v268 = vrot.slane %v155, %v267
    %v269 = vlaneseq
    %v270 = vshrl.u32 %v269, 7
    %v271 = vsub.s32 1, %v270
    %v272 = vrot.slane %v155, %v271
    %v307 = vunpack.c.l.b16 %v232
    %v308 = vunpack.c.h.b16 %v232
    %v309 = vunpack.c.l.b16 %v233
    %v310 = vunpack.c.h.b16 %v233
    %v311 = vunpack.c.l.b16 %v234
    %v312 = vunpack.c.h.b16 %v234
    %v313 = vunpack.c.l.b16 %v235
    %v314 = vunpack.c.h.b16 %v235
    %v315 = vunpack.c.l.b16 %v236
    %v316 = vunpack.c.h.b16 %v236
    %v317 = vunpack.c.l.b16 %v237
    %v318 = vunpack.c.h.b16 %v237
    %v319 = vunpack.c.l.b16 %v238
    %v320 = vunpack.c.h.b16 %v238
    %v321 = vunpack.c.l.b16 %v239
    %v322 = vunpack.c.h.b16 %v239
    %v323 = vunpack.c.l.b16 %v240
    %v324 = vunpack.c.h.b16 %v240
    %v325 = vunpack.c.l.b16 %v241
    %v326 = vunpack.c.h.b16 %v241
    %v327 = vunpack.c.l.b16 %v242
    %v328 = vunpack.c.h.b16 %v242
    %v329 = vunpack.c.l.b16 %v243
    %v330 = vunpack.c.h.b16 %v243
    %v331 = vunpack.c.l.b16 %v244
    %v332 = vunpack.c.h.b16 %v244
    %v333 = vunpack.c.l.b16 %v245
    %v334 = vunpack.c.h.b16 %v245
    %v335 = vunpack.c.l.b16 %v246
    %v336 = vunpack.c.h.b16 %v246
    %v337 = vunpack.c.l.b16 %v247
    %v338 = vunpack.c.h.b16 %v247
    %v339 = vunpack.c.l.b16 %v248
    %v340 = vunpack.c.h.b16 %v248
    %v341 = vunpack.c.l.b16 %v249
    %v342 = vunpack.c.h.b16 %v249
    %v343 = vunpack.c.l.b16 %v250
    %v344 = vunpack.c.h.b16 %v250
    %v345 = vunpack.c.l.b16 %v251
    %v346 = vunpack.c.h.b16 %v251
    %v347 = vunpack.c.l.b16 %v252
    %v348 = vunpack.c.h.b16 %v252
    %v349 = vunpack.c.l.b16 %v253
    %v350 = vunpack.c.h.b16 %v253
    %v351 = vunpack.c.l.b16 %v254
    %v352 = vunpack.c.h.b16 %v254
    %v353 = vunpack.c.l.b16 %v255
    %v354 = vunpack.c.h.b16 %v255
    %v355 = vunpack.c.l.b16 %v256
    %v356 = vunpack.c.h.b16 %v256
    %v357 = vunpack.c.l.b16 %v257
    %v358 = vunpack.c.h.b16 %v257
    %v359 = vunpack.c.l.b16 %v258
    %v360 = vunpack.c.h.b16 %v258
    %v361 = vunpack.c.l.b16 %v259
    %v362 = vunpack.c.h.b16 %v259
    %v363 = vunpack.c.l.b16 %v260
    %v364 = vunpack.c.h.b16 %v260
    %v365 = vunpack.c.l.b16 %v261
    %v366 = vunpack.c.h.b16 %v261
    %v367 = vunpack.c.l.b16 %v262
    %v368 = vunpack.c.h.b16 %v262
    %v369 = vunpack.c.l.b16 %v263
    %v370 = vunpack.c.h.b16 %v263
    %v371 = vpack.c.b16 %v309, %v307
    %v372 = vpack.c.b16 %v310, %v308
    %v373 = vpack.c.b16 %v313, %v311
    %v374 = vpack.c.b16 %v314, %v312
    %v375 = vpack.c.b16 %v317, %v315
    %v376 = vpack.c.b16 %v318, %v316
    %v377 = vpack.c.b16 %v321, %v319
    %v378 = vpack.c.b16 %v322, %v320
    %v379 = vpack.c.b16 %v325, %v323
    %v380 = vpack.c.b16 %v326, %v324
    %v381 = vpack.c.b16 %v329, %v327
    %v382 = vpack.c.b16 %v330, %v328
    %v383 = vpack.c.b16 %v333, %v331
    %v384 = vpack.c.b16 %v334, %v332
    %v385 = vpack.c.b16 %v337, %v335
    %v386 = vpack.c.b16 %v338, %v336
    %v387 = vpack.c.b16 %v341, %v339
    %v388 = vpack.c.b16 %v342, %v340
    %v389 = vpack.c.b16 %v345, %v343
    %v390 = vpack.c.b16 %v346, %v344
    %v391 = vpack.c.b16 %v349, %v347
    %v392 = vpack.c.b16 %v350, %v348
    %v393 = vpack.c.b16 %v353, %v351
    %v394 = vpack.c.b16 %v354, %v352
    %v395 = vpack.c.b16 %v357, %v355
    %v396 = vpack.c.b16 %v358, %v356
    %v397 = vpack.c.b16 %v361, %v359
    %v398 = vpack.c.b16 %v362, %v360
    %v399 = vpack.c.b16 %v365, %v363
    %v400 = vpack.c.b16 %v366, %v364
    %v401 = vpack.c.b16 %v369, %v367
    %v402 = vpack.c.b16 %v370, %v368
    %435 = vmatprep.subr.bf16.mxu0 %v372
    %436 = vmatpush1.bf16.msra.mxu0 %v371
    %437 = vmatprep.subr.bf16.mxu0 %v374
    %438 = vmatpush1.bf16.msra.mxu0 %v373
    %439 = vmatprep.subr.bf16.mxu0 %v376
    %440 = vmatpush1.bf16.msra.mxu0 %v375
    %441 = vmatprep.subr.bf16.mxu0 %v378
    %442 = vmatpush1.bf16.msra.mxu0 %v377
    %443 = vmatprep.subr.bf16.mxu0 %v380
    %444 = vmatpush1.bf16.msra.mxu0 %v379
    %445 = vmatprep.subr.bf16.mxu0 %v382
    %446 = vmatpush1.bf16.msra.mxu0 %v381
    %447 = vmatprep.subr.bf16.mxu0 %v384
    %448 = vmatpush1.bf16.msra.mxu0 %v383
    %449 = vmatprep.subr.bf16.mxu0 %v386
    %450 = vmatpush1.bf16.msra.mxu0 %v385
    %451 = vmatprep.subr.bf16.mxu0 %v388
    %452 = vmatpush1.bf16.msra.mxu0 %v387
    %453 = vmatprep.subr.bf16.mxu0 %v390
    %454 = vmatpush1.bf16.msra.mxu0 %v389
    %455 = vmatprep.subr.bf16.mxu0 %v392
    %456 = vmatpush1.bf16.msra.mxu0 %v391
    %457 = vmatprep.subr.bf16.mxu0 %v394
    %458 = vmatpush1.bf16.msra.mxu0 %v393
    %459 = vmatprep.subr.bf16.mxu0 %v396
    %460 = vmatpush1.bf16.msra.mxu0 %v395
    %461 = vmatprep.subr.bf16.mxu0 %v398
    %462 = vmatpush1.bf16.msra.mxu0 %v397
    %463 = vmatprep.subr.bf16.mxu0 %v400
    %464 = vmatpush1.bf16.msra.mxu0 %v399
    %465 = vmatprep.subr.bf16.mxu0 %v402
    %466 = vmatpush1.bf16.msra.mxu0 %v401
    %467 = vmatprep.mubr.bf16.mxu0 %v231
    %468 = vmatmul.mubr.bf16.gmra.mrb[0].mxu0 %v230
    %v469 = vpop.f32.mrb[0].mxu0
    %v470 = vadd.f32 %v268, %v469
    %v471 = vpop.f32.mrb[0].mxu0
    %v472 = vadd.f32 %v272, %v471
    %v473 = vpop.f32.mrb[0].mxu0
    %v474 = vpop.f32.mrb[0].mxu0
    %475 = vdwg.mxu0
    %v476 = vmax.f32 %v470, 0.0
    %v477 = vmax.f32 %v472, 0.0
    %v479 = vlaneseq
    %v480 = vshrl.u32 %v479, 7
    %v481 = vsub.s32 0, %v480
    %v482 = vrot.slane %v157, %v481
    %v483 = vlaneseq
    %v484 = vshrl.u32 %v483, 7
    %v485 = vsub.s32 1, %v484
    %v486 = vrot.slane %v157, %v485
    %v489 = vmul.f32 %v476, %v482
    %v490 = vmul.f32 %v477, %v486
    %vm491 = vcmask 1041408
    %v492 = vsel %vm491, %v489, 0.0
    %v493 = vsel %vm491, %v490, 0.0
    %v494 = vadd.f32 %v492, %v493
    %495 = vadd.xlane.f32.xlu0 %v494
    %v496 = vpop.xlane.xlu0 %495
    %v497 = vlaneseq
    %v498 = vshrl.u32 %v497, 7
    %v499 = vsub.s32 0, %v498
    %v500 = vrot.slane %v158, %v499
    %v501 = vadd.f32 %v496, %v500
    %503 = vset.pattern.permute.xlu0 0
    %504 = vperm.xlu0 %503, %v501
    %v505 = vpop.permute.xlu0 %504
    %507 = vst [vmem:[#allocation8] sm:$0x3] %v505
    // Predicated region
    $region30: #{tpu_custom_call.1} parent=1 // pred_check
      _
    $region31: #{tpu_custom_call.1} parent=1 // pred_check_branch
      %509 = sbr.rel (0) target = $region33
    $region32: #{tpu_custom_call.1} parent=1 // pred_region
      %s511 = ssub.s32 32, 32
      %512 = vsyncadd [#allocation4], %s511
      %s514 = sshll.u32 [#allocation8], 4
      %s515 = int_to_ptr.vmem [resolvable:$true] %s514
      %517 = dma.vmem_to_hbm [thread:$0]  %s515, 32, %s4, [#allocation4]
    $region33: #{tpu_custom_call.1} parent=1 // pred_fallthru
      _
    // Predicated region
    $region34: #{tpu_custom_call.1} parent=1 // pred_check
      _
    $region35: #{tpu_custom_call.1} parent=1 // pred_check_branch
      %519 = sbr.rel (0) target = $region37
    $region36: #{tpu_custom_call.1} parent=1 // pred_region
      %520 = dma.done [#allocation4], 32
    $region37: #{tpu_custom_call.1} parent=1 // pred_fallthru
      _
    %521 = vsyncpa [#allocation3], 1
    %522 = vsyncpa [#allocation6], 1
    %523 = vsyncpa [#allocation4], 1

</llo_original>
